<compile_context>
chip_gen: v5e
topology: v5e:2x2
jax: 0.10.0
libtpu: 0.0.40
codegen_flags: <defaults>
</compile_context>

<pallas_src>
import jax
import jax.numpy as jnp
from jax.experimental import pallas as pl
from jax.experimental.pallas import tpu as pltpu

ALPHA = 0.7
TEMPERATURE = 4.0


def _make_kernel(B, C, TB, alpha, temperature):
    inv_t = 1.0 / temperature
    t_sq = temperature * temperature

    def kernel(student_ref, teacher_ref, labels_ref, out_ref, acc_ref):
        i = pl.program_id(0)
        n = pl.num_programs(0)

        @pl.when(i == 0)
        def _init():
            acc_ref[0] = 0.0   # running KL sum
            acc_ref[1] = 0.0   # running BCE sum

        x = student_ref[...].astype(jnp.float32)   # student logits (TB, C)
        t = teacher_ref[...].astype(jnp.float32)   # teacher logits (TB, C)
        y = labels_ref[...].astype(jnp.float32)    # labels         (TB, C)

        # Mask rows of a ragged / overhanging last tile (padded DMA data may be
        # garbage); zero the inputs so all per-row math stays finite.
        row_ids = i * TB + jax.lax.broadcasted_iota(jnp.int32, (TB, 1), 0)
        row_mask = row_ids < B                     # (TB, 1)
        x = jnp.where(row_mask, x, 0.0)
        t = jnp.where(row_mask, t, 0.0)
        y = jnp.where(row_mask, y, 0.0)

        # ---- soft targets: sigmoid(teacher/T) and log(sigmoid), fused ----
        # Clamp the exponent so extreme teacher logits stay finite
        # (PyTorch-style 0 * log 0 -> 0 behaviour instead of NaN).
        neg_ts = jnp.minimum(-t * inv_t, 80.0)
        e = jnp.exp(neg_ts)
        soft_targets = 1.0 / (1.0 + e)             # sigmoid(t/T)
        log_soft_targets = -jnp.log1p(e)           # log(sigmoid(t/T))

        # ---- soft student: log_softmax(student/T, axis=1), stable ----
        xs = x * inv_t
        m = jnp.max(xs, axis=1, keepdims=True)
        z = xs - m
        lse = jnp.log(jnp.sum(jnp.exp(z), axis=1, keepdims=True))
        log_soft_student = z - lse

        # ---- one lane-reduce per stream, mask padded rows, accumulate ----
        kl = soft_targets * (log_soft_targets - log_soft_student)
        kl_row = jnp.sum(kl, axis=1, keepdims=True)                       # (TB, 1)

        bce = jnp.maximum(x, 0.0) - x * y + jnp.log1p(jnp.exp(-jnp.abs(x)))
        bce_row = jnp.sum(bce, axis=1, keepdims=True)                     # (TB, 1)

        kl_row = jnp.where(row_mask, kl_row, 0.0)
        bce_row = jnp.where(row_mask, bce_row, 0.0)

        acc_ref[0] += jnp.sum(kl_row)
        acc_ref[1] += jnp.sum(bce_row)

        @pl.when(i == n - 1)
        def _finalize():
            distill = (acc_ref[0] / B) * t_sq          # KLDiv 'batchmean' * T^2
            student = acc_ref[1] / (B * C)             # BCEWithLogits mean
            out_ref[0, 0] = alpha * distill + (1.0 - alpha) * student

    return kernel


def distillation_loss(student_logits, teacher_logits, labels,
                      *, alpha=ALPHA, temperature=TEMPERATURE):
    """Scalar float32 loss, same semantics as the PyTorch DistillationLoss."""
    assert student_logits.shape == teacher_logits.shape == labels.shape
    B, C = student_logits.shape

    # Batch tile sized for the smallest VMEM generation (v7x: 64 MiB/TC):
    # 3 streams x 2 pipeline buffers x TB x C x 4 B (f32 worst case) <= ~48 MiB.
    vmem_budget = 48 * 1024 * 1024
    bytes_per_row = 3 * 2 * C * 4
    tb = max(8, min(512, (vmem_budget // bytes_per_row) // 8 * 8))
    tb = min(tb, ((B + 7) // 8) * 8)

    grid = (pl.cdiv(B, tb),)
    kernel = _make_kernel(B, C, tb, float(alpha), float(temperature))

    vmem_limit = int(min(60 * 2**20, max(16 * 2**20, 3 * 2 * tb * C * 4 + 8 * 2**20)))

    out = pl.pallas_call(
        kernel,
        out_shape=jax.ShapeDtypeStruct((1, 1), jnp.float32),
        grid_spec=pltpu.PrefetchScalarGridSpec(
            num_scalar_prefetch=0,
            grid=grid,
            in_specs=[
                pl.BlockSpec((tb, C), lambda i: (i, 0)),
                pl.BlockSpec((tb, C), lambda i: (i, 0)),
                pl.BlockSpec((tb, C), lambda i: (i, 0)),
            ],
            out_specs=pl.BlockSpec((1, 1), lambda i: (0, 0),
                                   memory_space=pltpu.SMEM),
            scratch_shapes=[pltpu.SMEM((2,), jnp.float32)],
        ),
        compiler_params=pltpu.CompilerParams(
            dimension_semantics=("arbitrary",),
            vmem_limit_bytes=vmem_limit,
        ),
    )(student_logits, teacher_logits, labels)
    return out[0, 0]


def _reference_loss(student_logits, teacher_logits, labels,
                    alpha=ALPHA, temperature=TEMPERATURE):
    """Plain-JAX reference mirroring the PyTorch forward, for verification."""
    x = student_logits.astype(jnp.float32)
    t = teacher_logits.astype(jnp.float32)
    y = labels.astype(jnp.float32)
    soft_targets = jax.nn.sigmoid(t / temperature)
    log_soft_student = jax.nn.log_softmax(x / temperature, axis=1)
    kl = soft_targets * (jnp.log(soft_targets) - log_soft_student)
    distill = (jnp.sum(kl) / x.shape[0]) * (temperature ** 2)
    bce = jnp.maximum(x, 0.0) - x * y + jnp.log1p(jnp.exp(-jnp.abs(x)))
    student = jnp.mean(bce)
    return alpha * distill + (1.0 - alpha) * student


if __name__ == "__main__":
    key = jax.random.PRNGKey(0)
    k1, k2, k3, k4, k5, k6 = jax.random.split(key, 6)

    # Case 1: small aligned shape (batch=8, classes=128).
    B, C = 8, 128
    s = jax.random.normal(k1, (B, C), dtype=jnp.float32)
    t = jax.random.normal(k2, (B, C), dtype=jnp.float32)
    y = jax.random.bernoulli(k3, p=0.3, shape=(B, C)).astype(jnp.float32)
    loss = jax.block_until_ready(distillation_loss(s, t, y))
    ref = _reference_loss(s, t, y)
    assert jnp.allclose(loss, ref, rtol=1e-5, atol=1e-5), (loss, ref)

    # Case 2: ragged batch (exercises padded-row masking + true-B divisors).
    B2, C2 = 12, 256
    s2 = jax.random.normal(k4, (B2, C2), dtype=jnp.float32)
    t2 = jax.random.normal(k5, (B2, C2), dtype=jnp.float32)
    y2 = jax.random.bernoulli(k6, p=0.3, shape=(B2, C2)).astype(jnp.float32)
    loss2 = jax.block_until_ready(distillation_loss(s2, t2, y2))
    ref2 = _reference_loss(s2, t2, y2)
    assert jnp.allclose(loss2, ref2, rtol=1e-5, atol=1e-5), (loss2, ref2)

    print("KERNEL_OK")
</pallas_src>

<mosaic_0001>
module attributes {stable_mosaic.version = 11 : i64} {
  func.func @kernel(%arg0: i32, %arg1: memref<8x128xf32, #tpu.memory_space<vmem>>, %arg2: memref<8x128xf32, #tpu.memory_space<vmem>>, %arg3: memref<8x128xf32, #tpu.memory_space<vmem>>, %arg4: memref<1x1xf32, #tpu.memory_space<smem>>, %arg5: memref<2xf32, #tpu.memory_space<smem>>) attributes {dimension_semantics = [#tpu.dimension_semantics<arbitrary>], iteration_bounds = array<i64: 1>, scalar_prefetch = 0 : i64, scratch_operands = 1 : i64, tpu.core_type = #tpu.core_type<tc>, window_params = [{transform_indices = @transform_0, window_bounds = array<i64: 8, 128>}, {transform_indices = @transform_1, window_bounds = array<i64: 8, 128>}, {transform_indices = @transform_2, window_bounds = array<i64: 8, 128>}, {transform_indices = @transform_3, window_bounds = array<i64: 1, 1>}]} {
    %c0_i32 = arith.constant 0 : i32
    %0 = arith.cmpi eq, %arg0, %c0_i32 : i32
    %1 = arith.extui %0 : i1 to i32
    %c0_i32_0 = arith.constant 0 : i32
    %2 = arith.cmpi ne, %1, %c0_i32_0 : i32
    scf.if %2 {
      %cst_31 = arith.constant 0.000000e+00 : f32
      %c0_32 = arith.constant 0 : index
      %87 = memref.load %arg5[%c0_32] : memref<2xf32, #tpu.memory_space<smem>>
      memref.store %cst_31, %arg5[%c0_32] : memref<2xf32, #tpu.memory_space<smem>>
      %cst_33 = arith.constant 0.000000e+00 : f32
      %c1_34 = arith.constant 1 : index
      %88 = memref.load %arg5[%c1_34] : memref<2xf32, #tpu.memory_space<smem>>
      memref.store %cst_33, %arg5[%c1_34] : memref<2xf32, #tpu.memory_space<smem>>
    } else {
    }
    %c0 = arith.constant 0 : index
    %c0_1 = arith.constant 0 : index
    %3 = vector.load %arg1[%c0, %c0_1] : memref<8x128xf32, #tpu.memory_space<vmem>>, vector<8x128xf32>
    %c0_2 = arith.constant 0 : index
    %c0_3 = arith.constant 0 : index
    %4 = vector.load %arg2[%c0_2, %c0_3] : memref<8x128xf32, #tpu.memory_space<vmem>>, vector<8x128xf32>
    %c0_4 = arith.constant 0 : index
    %c0_5 = arith.constant 0 : index
    %5 = vector.load %arg3[%c0_4, %c0_5] : memref<8x128xf32, #tpu.memory_space<vmem>>, vector<8x128xf32>
    %c8_i32 = arith.constant 8 : i32
    %6 = arith.muli %arg0, %c8_i32 : i32
    %7 = tpu.iota {dimensions = array<i32: 0>} : vector<8x1xi32>
    %8 = vector.broadcast %6 : i32 to vector<8x1xi32>
    %9 = arith.addi %8, %7 : vector<8x1xi32>
    %c8_i32_6 = arith.constant 8 : i32
    %10 = vector.broadcast %c8_i32_6 : i32 to vector<8x1xi32>
    %11 = arith.cmpi slt, %9, %10 : vector<8x1xi32>
    %cst = arith.constant 0.000000e+00 : f32
    %12 = vector.shape_cast %11 : vector<8x1xi1> to vector<8x1xi1>
    %13 = vector.broadcast %12 : vector<8x1xi1> to vector<8x128xi1>
    %14 = vector.broadcast %cst : f32 to vector<8x128xf32>
    %15 = arith.select %13, %3, %14 : vector<8x128xi1>, vector<8x128xf32>
    %cst_7 = arith.constant 0.000000e+00 : f32
    %16 = vector.shape_cast %11 : vector<8x1xi1> to vector<8x1xi1>
    %17 = vector.broadcast %16 : vector<8x1xi1> to vector<8x128xi1>
    %18 = vector.broadcast %cst_7 : f32 to vector<8x128xf32>
    %19 = arith.select %17, %4, %18 : vector<8x128xi1>, vector<8x128xf32>
    %cst_8 = arith.constant 0.000000e+00 : f32
    %20 = vector.shape_cast %11 : vector<8x1xi1> to vector<8x1xi1>
    %21 = vector.broadcast %20 : vector<8x1xi1> to vector<8x128xi1>
    %22 = vector.broadcast %cst_8 : f32 to vector<8x128xf32>
    %23 = arith.select %21, %5, %22 : vector<8x128xi1>, vector<8x128xf32>
    %cst_9 = arith.constant 0.000000e+00 : f32
    %24 = vector.broadcast %cst_9 : f32 to vector<8x128xf32>
    %25 = arith.subf %24, %19 : vector<8x128xf32>
    %cst_10 = arith.constant 2.500000e-01 : f32
    %26 = vector.broadcast %cst_10 : f32 to vector<8x128xf32>
    %27 = arith.mulf %25, %26 : vector<8x128xf32>
    %cst_11 = arith.constant 8.000000e+01 : f32
    %28 = vector.broadcast %cst_11 : f32 to vector<8x128xf32>
    %29 = arith.minimumf %27, %28 : vector<8x128xf32>
    %30 = math.exp %29 : vector<8x128xf32>
    %cst_12 = arith.constant 1.000000e+00 : f32
    %31 = vector.broadcast %cst_12 : f32 to vector<8x128xf32>
    %32 = arith.addf %31, %30 : vector<8x128xf32>
    %cst_13 = arith.constant 1.000000e+00 : f32
    %33 = vector.broadcast %cst_13 : f32 to vector<8x128xf32>
    %34 = arith.divf %33, %32 : vector<8x128xf32>
    %35 = math.log1p %30 : vector<8x128xf32>
    %cst_14 = arith.constant 0.000000e+00 : f32
    %36 = vector.broadcast %cst_14 : f32 to vector<8x128xf32>
    %37 = arith.subf %36, %35 : vector<8x128xf32>
    %cst_15 = arith.constant 2.500000e-01 : f32
    %38 = vector.broadcast %cst_15 : f32 to vector<8x128xf32>
    %39 = arith.mulf %15, %38 : vector<8x128xf32>
    %cst_16 = arith.constant dense<0xFF800000> : vector<8xf32>
    %40 = vector.multi_reduction <maximumf>, %39, %cst_16 [1] : vector<8x128xf32> to vector<8xf32>
    %41 = vector.shape_cast %40 : vector<8xf32> to vector<8x1xf32>
    %42 = vector.broadcast %41 : vector<8x1xf32> to vector<8x128xf32>
    %43 = arith.subf %39, %42 : vector<8x128xf32>
    %44 = math.exp %43 : vector<8x128xf32>
    %cst_17 = arith.constant dense<0.000000e+00> : vector<8xf32>
    %45 = vector.multi_reduction <add>, %44, %cst_17 [1] : vector<8x128xf32> to vector<8xf32>
    %46 = vector.shape_cast %45 : vector<8xf32> to vector<8x1xf32>
    %47 = math.log %46 : vector<8x1xf32>
    %48 = vector.broadcast %47 : vector<8x1xf32> to vector<8x128xf32>
    %49 = arith.subf %43, %48 : vector<8x128xf32>
    %50 = arith.subf %37, %49 : vector<8x128xf32>
    %51 = arith.mulf %34, %50 : vector<8x128xf32>
    %cst_18 = arith.constant dense<0.000000e+00> : vector<8xf32>
    %52 = vector.multi_reduction <add>, %51, %cst_18 [1] : vector<8x128xf32> to vector<8xf32>
    %53 = vector.shape_cast %52 : vector<8xf32> to vector<8x1xf32>
    %cst_19 = arith.constant 0.000000e+00 : f32
    %54 = vector.broadcast %cst_19 : f32 to vector<8x128xf32>
    %55 = arith.maximumf %15, %54 : vector<8x128xf32>
    %56 = arith.mulf %15, %23 : vector<8x128xf32>
    %57 = arith.subf %55, %56 : vector<8x128xf32>
    %58 = math.absf %15 : vector<8x128xf32>
    %cst_20 = arith.constant 0.000000e+00 : f32
    %59 = vector.broadcast %cst_20 : f32 to vector<8x128xf32>
    %60 = arith.subf %59, %58 : vector<8x128xf32>
    %61 = math.exp %60 : vector<8x128xf32>
    %62 = math.log1p %61 : vector<8x128xf32>
    %63 = arith.addf %57, %62 : vector<8x128xf32>
    %cst_21 = arith.constant dense<0.000000e+00> : vector<8xf32>
    %64 = vector.multi_reduction <add>, %63, %cst_21 [1] : vector<8x128xf32> to vector<8xf32>
    %65 = vector.shape_cast %64 : vector<8xf32> to vector<8x1xf32>
    %cst_22 = arith.constant 0.000000e+00 : f32
    %66 = vector.broadcast %cst_22 : f32 to vector<8x1xf32>
    %67 = arith.select %11, %53, %66 : vector<8x1xi1>, vector<8x1xf32>
    %cst_23 = arith.constant 0.000000e+00 : f32
    %68 = vector.broadcast %cst_23 : f32 to vector<8x1xf32>
    %69 = arith.select %11, %65, %68 : vector<8x1xi1>, vector<8x1xf32>
    %c0_24 = arith.constant 0 : index
    %70 = memref.load %arg5[%c0_24] : memref<2xf32, #tpu.memory_space<smem>>
    %71 = vector.shape_cast %67 : vector<8x1xf32> to vector<1x8x1xf32>
    %cst_25 = arith.constant dense<0.000000e+00> : vector<1xf32>
    %72 = vector.multi_reduction <add>, %71, %cst_25 [1, 2] : vector<1x8x1xf32> to vector<1xf32>
    %73 = vector.shape_cast %72 : vector<1xf32> to vector<1x1x1xf32>
    %74 = vector.extract %73[0, 0, 0] : f32 from vector<1x1x1xf32>
    %75 = arith.addf %70, %74 : f32
    %c0_26 = arith.constant 0 : index
    %76 = memref.load %arg5[%c0_26] : memref<2xf32, #tpu.memory_space<smem>>
    memref.store %75, %arg5[%c0_26] : memref<2xf32, #tpu.memory_space<smem>>
    %c1 = arith.constant 1 : index
    %77 = memref.load %arg5[%c1] : memref<2xf32, #tpu.memory_space<smem>>
    %78 = vector.shape_cast %69 : vector<8x1xf32> to vector<1x8x1xf32>
    %cst_27 = arith.constant dense<0.000000e+00> : vector<1xf32>
    %79 = vector.multi_reduction <add>, %78, %cst_27 [1, 2] : vector<1x8x1xf32> to vector<1xf32>
    %80 = vector.shape_cast %79 : vector<1xf32> to vector<1x1x1xf32>
    %81 = vector.extract %80[0, 0, 0] : f32 from vector<1x1x1xf32>
    %82 = arith.addf %77, %81 : f32
    %c1_28 = arith.constant 1 : index
    %83 = memref.load %arg5[%c1_28] : memref<2xf32, #tpu.memory_space<smem>>
    memref.store %82, %arg5[%c1_28] : memref<2xf32, #tpu.memory_space<smem>>
    %c0_i32_29 = arith.constant 0 : i32
    %84 = arith.cmpi eq, %arg0, %c0_i32_29 : i32
    %85 = arith.extui %84 : i1 to i32
    %c0_i32_30 = arith.constant 0 : i32
    %86 = arith.cmpi ne, %85, %c0_i32_30 : i32
    scf.if %86 {
      %c0_31 = arith.constant 0 : index
      %87 = memref.load %arg5[%c0_31] : memref<2xf32, #tpu.memory_space<smem>>
      %cst_32 = arith.constant 8.000000e+00 : f32
      %88 = arith.divf %87, %cst_32 : f32
      %cst_33 = arith.constant 1.600000e+01 : f32
      %89 = arith.mulf %88, %cst_33 : f32
      %c1_34 = arith.constant 1 : index
      %90 = memref.load %arg5[%c1_34] : memref<2xf32, #tpu.memory_space<smem>>
      %cst_35 = arith.constant 1.024000e+03 : f32
      %91 = arith.divf %90, %cst_35 : f32
      %cst_36 = arith.constant 0.699999988 : f32
      %92 = arith.mulf %cst_36, %89 : f32
      %cst_37 = arith.constant 3.000000e-01 : f32
      %93 = arith.mulf %cst_37, %91 : f32
      %94 = arith.addf %92, %93 : f32
      %c0_38 = arith.constant 0 : index
      %c0_39 = arith.constant 0 : index
      %95 = memref.load %arg4[%c0_38, %c0_39] : memref<1x1xf32, #tpu.memory_space<smem>>
      memref.store %94, %arg4[%c0_38, %c0_39] : memref<1x1xf32, #tpu.memory_space<smem>>
    } else {
    }
    return
  }
  func.func @transform_0(%arg0: i32) -> (i32, i32) {
    %c0_i32 = arith.constant 0 : i32
    %c0_i32_0 = arith.constant 0 : i32
    return %arg0, %c0_i32 : i32, i32
  }
  func.func @transform_1(%arg0: i32) -> (i32, i32) {
    %c0_i32 = arith.constant 0 : i32
    %c0_i32_0 = arith.constant 0 : i32
    return %arg0, %c0_i32 : i32, i32
  }
  func.func @transform_2(%arg0: i32) -> (i32, i32) {
    %c0_i32 = arith.constant 0 : i32
    %c0_i32_0 = arith.constant 0 : i32
    return %arg0, %c0_i32 : i32, i32
  }
  func.func @transform_3(%arg0: i32) -> (i32, i32) {
    %c0_i32 = arith.constant 0 : i32
    %c0_i32_0 = arith.constant 0 : i32
    %c0_i32_1 = arith.constant 0 : i32
    return %c0_i32, %c0_i32_0 : i32, i32
  }
}

</mosaic_0001>

<llo_original>
// kernel: tpu_custom_call.1
$region0: #{tpu_custom_call.1}
  #allocation0 [shape = 'u32[]', space=smem, size = 0x4, offset = 0x4, fixed_abs, tag = 'smem constant byte address 0x4 - core index']
  #allocation1 [shape = 'u32[72,128]{1,0:T(1,128)}', space=vmem, size = 0x9000, scoped, tag = 'internal scratch']
  #allocation2 [shape = 'f32[2]{0:T(128)}', space=smem, size = 0x200, scoped, tag = 'scratch operand']
  %s0 = inlined_call_operand.hbm [shape: f32[8,128], index: 0, kind: input, shape index: {}]
  %s1 = inlined_call_operand.hbm [shape: f32[8,128], index: 1, kind: input, shape index: {}]
  %s2 = inlined_call_operand.hbm [shape: f32[8,128], index: 2, kind: input, shape index: {}]
  %s3 = inlined_call_operand.hbm [shape: f32[1,1], index: 3, kind: output, shape index: {}]
  %s4 = sld [smem:[#allocation0]]
  $region42: #{tpu_custom_call.1} parent=0
    _
  %s6 = ssub.s32 1, %s4
  %s7 = scalar_select 0, %s6, %s4
  $region1: #{tpu_custom_call.1} parent=0
    #allocation3 [shape = 'u8[4096]{0}', space=vmem, size = 0x1000, scoped, tag = 'input window, operand 0, single buffered']
    #allocation4 [shape = 's32[1]{0}', space=sflag, size = 0x4, scoped, tag = 'scoped memory for tpu_custom_call.1']
    #allocation5 [shape = 's32[1]{0}', space=sflag, size = 0x4, scoped, tag = 'scoped memory for tpu_custom_call.1']
    #allocation6 [shape = 'u8[4096]{0}', space=vmem, size = 0x1000, scoped, tag = 'input window, operand 1, single buffered']
    #allocation7 [shape = 's32[1]{0}', space=sflag, size = 0x4, scoped, tag = 'scoped memory for tpu_custom_call.1']
    #allocation8 [shape = 'u8[4096]{0}', space=vmem, size = 0x1000, scoped, tag = 'input window, operand 2, single buffered']
    #allocation9 [shape = 'u8[512]{0}', space=smem, size = 0x200, scoped, tag = 'output window, operand 0, single buffered']
    %8 = vsyncpa [#allocation4], 0
    %9 = vsyncpa [#allocation7], 0
    %10 = vsyncpa [#allocation5], 0
    // Predicated region
    $region2: #{tpu_custom_call.1} parent=1 // pred_check
      _
    $region3: #{tpu_custom_call.1} parent=1 // pred_check_branch
      %12 = sbr.rel (0) target = $region5
    $region4: #{tpu_custom_call.1} parent=1 // pred_region
      %14 = vsyncadd [#allocation4], 0
      %s16 = sshll.u32 %s0, 4
      %s17 = int_to_ptr.hbm [resolvable:$true] %s16
      %s18 = sshll.u32 [#allocation3], 4
      %s19 = int_to_ptr.vmem [resolvable:$true] %s18
      %21 = dma.hbm_to_vmem [thread:$0]  %s17, 128, %s19, [#allocation4]
    $region5: #{tpu_custom_call.1} parent=1 // pred_fallthru
      _
    // Predicated region
    $region6: #{tpu_custom_call.1} parent=1 // pred_check
      _
    $region7: #{tpu_custom_call.1} parent=1 // pred_check_branch
      %23 = sbr.rel (0) target = $region9
    $region8: #{tpu_custom_call.1} parent=1 // pred_region
      %25 = vsyncadd [#allocation7], 0
      %s27 = sshll.u32 %s1, 4
      %s28 = int_to_ptr.hbm [resolvable:$true] %s27
      %s29 = sshll.u32 [#allocation6], 4
      %s30 = int_to_ptr.vmem [resolvable:$true] %s29
      %32 = dma.hbm_to_vmem [thread:$0]  %s28, 128, %s30, [#allocation7]
    $region9: #{tpu_custom_call.1} parent=1 // pred_fallthru
      _
    // Predicated region
    $region10: #{tpu_custom_call.1} parent=1 // pred_check
      _
    $region11: #{tpu_custom_call.1} parent=1 // pred_check_branch
      %34 = sbr.rel (0) target = $region13
    $region12: #{tpu_custom_call.1} parent=1 // pred_region
      %36 = vsyncadd [#allocation7], 0
      %s38 = sshll.u32 %s2, 4
      %s39 = int_to_ptr.hbm [resolvable:$true] %s38
      %s40 = sshll.u32 [#allocation8], 4
      %s41 = int_to_ptr.vmem [resolvable:$true] %s40
      %43 = dma.hbm_to_vmem [thread:$0]  %s39, 128, %s41, [#allocation7]
    $region13: #{tpu_custom_call.1} parent=1 // pred_fallthru
      _
    // Predicated region
    $region14: #{tpu_custom_call.1} parent=1 // pred_check
      _
    $region15: #{tpu_custom_call.1} parent=1 // pred_check_branch
      %45 = sbr.rel (0) target = $region17
    $region16: #{tpu_custom_call.1} parent=1 // pred_region
      %47 = dma.done [#allocation4], 128
    $region17: #{tpu_custom_call.1} parent=1 // pred_fallthru
      _
    // Predicated region
    $region18: #{tpu_custom_call.1} parent=1 // pred_check
      _
    $region19: #{tpu_custom_call.1} parent=1 // pred_check_branch
      %49 = sbr.rel (0) target = $region21
    $region20: #{tpu_custom_call.1} parent=1 // pred_region
      %51 = dma.done [#allocation7], 128
    $region21: #{tpu_custom_call.1} parent=1 // pred_fallthru
      _
    // Predicated region
    $region22: #{tpu_custom_call.1} parent=1 // pred_check
      _
    $region23: #{tpu_custom_call.1} parent=1 // pred_check_branch
      %53 = sbr.rel (0) target = $region25
    $region24: #{tpu_custom_call.1} parent=1 // pred_region
      %55 = dma.done [#allocation7], 128
    $region25: #{tpu_custom_call.1} parent=1 // pred_fallthru
      _
    %p56 = scmp.eq.s32.totalorder 0, 0
    // Predicated region
    $region26: #{tpu_custom_call.1} parent=1 // pred_check
      %p57 = pneg %p56
    $region27: #{tpu_custom_call.1} parent=1 // pred_check_branch
      %59 = sbr.rel (%p57) target = $region29
    $region28: #{tpu_custom_call.1} parent=1 // pred_region
      %s60 = scalar_lea.smem [#allocation2], 0
      %61 = sst [smem:[%s60]] 0.0
      %s62 = scalar_lea.smem [#allocation2], 1
      %63 = sst [smem:[%s62]] 0.0
    $region29: #{tpu_custom_call.1} parent=1 // pred_fallthru
      _
    %v64 = vld [vmem:[#allocation3] sm:$0xff]
    %v65 = vld [vmem:[#allocation6] sm:$0xff]
    %v66 = vld [vmem:[#allocation8] sm:$0xff]
    %s67 = smul.u32 0, 8
    %v68 = vlaneseq
    %v69 = vshrl.u32 %v68, 7
    %v70 = vstv %s67
    %v71 = vadd.s32 %v70, %v69
    %vm72 = vcmp.lt.s32.totalorder %v71, 8
    %v73 = vsel %vm72, 1, 0
    %vm74 = vcmp.eq.s32.totalorder %v73, 1
    %v75 = vsel %vm74, %v64, 0.0
    %v76 = vsel %vm74, %v65, 0.0
    %v77 = vsel %vm74, %v66, 0.0
    %v78 = vsub.f32 0.0, %v76
    %v79 = vmul.f32 %v78, 0.25
    %v80 = vmin.f32 %v79, 80.0
    %v81 = vmul.f32 %v80, 1.442695
    %v82 = vpow.pop %v81
    %v83 = vadd.f32 %v82, 1.0
    %v84 = vrcp.pop %v83
    %v85 = vmul.f32 %v83, %v84
    %v86 = vsub.f32 1.0, %v85
    %v87 = vmul.f32 %v84, %v86
    %v88 = vadd.f32 %v84, %v87
    %vm89 = vweird.f32 %v83
    %vm90 = vweird.f32 %v84
    %vm91 = vmor %vm89, %vm90
    %v92 = vsel %vm91, %v84, %v88
    %v93 = vand.u32 2147483647, %v83
    %vm94 = vcmp.eq.f32.partialorder %v93, 8.507059e+37
    %v95 = vand.u32 %v83, 2147483648
    %v96 = vor.u32 1.1754944e-38, %v95
    %v97 = vsel %vm94, %v96, %v92
    %v98 = vmul.f32 1.0, %v97
    %v99 = vadd.f32 %v82, 1.0
    %v100 = vlog2.pop %v99
    %v101 = vmul.f32 %v100, 0.6931472
    %v102 = vmul.f32 -0.5, %v82
    %v103 = vadd.f32 %v102, 1.0
    %v104 = vmul.f32 %v103, %v82
    %v105 = vand.u32 2147483647, %v82
    %vm106 = vcmp.lt.f32.partialorder %v105, 0.0004427343
    %v107 = vsel %vm106, %v104, %v101
    %v108 = vsub.f32 0.0, %v107
    %v109 = vmul.f32 %v75, 0.25
    %110 = vmax.xlane.f32.xlu0 %v109
    %v111 = vpop.xlane.xlu0 %110
    %v112 = vsub.f32 %v109, %v111
    %v113 = vmul.f32 %v112, 1.442695
    %v114 = vpow.pop %v113
    %115 = vadd.xlane.f32.xlu0 %v114
    %v116 = vpop.xlane.xlu0 %115
    %v117 = vlog2.pop %v116
    %v118 = vmul.f32 %v117, 0.6931472
    %v119 = vsub.f32 %v112, %v118
    %v120 = vsub.f32 %v108, %v119
    %v121 = vmul.f32 %v98, %v120
    %122 = vadd.xlane.f32.xlu0 %v121
    %v123 = vpop.xlane.xlu0 %122
    %v124 = vmax.f32 %v75, 0.0
    %v125 = vmul.f32 %v75, %v77
    %v126 = vsub.f32 %v124, %v125
    %v127 = vand.u32 2147483647, %v75
    %v128 = vsub.f32 0.0, %v127
    %v129 = vmul.f32 %v128, 1.442695
    %v130 = vpow.pop %v129
    %v131 = vadd.f32 %v130, 1.0
    %v132 = vlog2.pop %v131
    %v133 = vmul.f32 %v132, 0.6931472
    %v134 = vmul.f32 -0.5, %v130
    %v135 = vadd.f32 %v134, 1.0
    %v136 = vmul.f32 %v135, %v130
    %v137 = vand.u32 2147483647, %v130
    %vm138 = vcmp.lt.f32.partialorder %v137, 0.0004427343
    %v139 = vsel %vm138, %v136, %v133
    %v140 = vadd.f32 %v126, %v139
    %141 = vadd.xlane.f32.xlu0 %v140
    %v142 = vpop.xlane.xlu0 %141
    %v143 = vsel %vm72, %v123, 0.0
    %v144 = vsel %vm72, %v142, 0.0
    %s145 = sld [smem:[#allocation2]]
    %vm146 = vcmask 7168
    %v147 = vsel %vm146, %v143, 0.0
    %148 = vadd.xlane.f32.xlu0 %v147
    %v149 = vpop.xlane.xlu0 %148
    %v150 = vrot.slane %v149, 4
    %v151 = vadd.f32 %v149, %v150
    %v152 = vrot.slane %v151, 2
    %v153 = vadd.f32 %v151, %v152
    %v154 = vrot.slane %v153, 1
    %v155 = vadd.f32 %v153, %v154
    %s156 = vtos %v155
    %s157 = sadd.f32 %s145, %s156
    %s158 = scalar_lea.smem [#allocation2], 0
    %159 = sst [smem:[%s158]] %s157
    %s160 = sld [smem:[#allocation2 + $0x1]]
    %v161 = vsel %vm146, %v144, 0.0
    %162 = vadd.xlane.f32.xlu0 %v161
    %v163 = vpop.xlane.xlu0 %162
    %v164 = vrot.slane %v163, 4
    %v165 = vadd.f32 %v163, %v164
    %v166 = vrot.slane %v165, 2
    %v167 = vadd.f32 %v165, %v166
    %v168 = vrot.slane %v167, 1
    %v169 = vadd.f32 %v167, %v168
    %s170 = vtos %v169
    %s171 = sadd.f32 %s160, %s170
    %s172 = scalar_lea.smem [#allocation2], 1
    %173 = sst [smem:[%s172]] %s171
    // Predicated region
    $region30: #{tpu_custom_call.1} parent=1 // pred_check
      %p174 = pneg %p56
    $region31: #{tpu_custom_call.1} parent=1 // pred_check_branch
      %176 = sbr.rel (%p174) target = $region33
    $region32: #{tpu_custom_call.1} parent=1 // pred_region
      %s177 = sld [smem:[#allocation2]]
      %v178 = vrcp.pop 8.0
      %v179 = vmul.f32 8.0, %v178
      %v180 = vsub.f32 1.0, %v179
      %v181 = vmul.f32 %v178, %v180
      %v182 = vadd.f32 %v178, %v181
      %vm183 = vweird.f32 %v178
      %v184 = vsel %vm183, %v178, %v182
      %s185 = vtos %v184
      %s186 = smul.f32 %s177, %s185
      %s187 = smul.f32 %s186, 16.0
      %s188 = sld [smem:[#allocation2 + $0x1]]
      %v189 = vrcp.pop 1024.0
      %v190 = vmul.f32 1024.0, %v189
      %v191 = vsub.f32 1.0, %v190
      %v192 = vmul.f32 %v189, %v191
      %v193 = vadd.f32 %v189, %v192
      %vm194 = vweird.f32 %v189
      %v195 = vsel %vm194, %v189, %v193
      %s196 = vtos %v195
      %s197 = smul.f32 %s188, %s196
      %s198 = smul.f32 %s187, 0.7
      %s199 = smul.f32 %s197, 0.3
      %s200 = sadd.f32 %s198, %s199
      %s201 = scalar_lea.smem [#allocation9], 0
      %202 = sst [smem:[%s201]] %s200
    $region33: #{tpu_custom_call.1} parent=1 // pred_fallthru
      _
    // Predicated region
    $region34: #{tpu_custom_call.1} parent=1 // pred_check
      _
    $region35: #{tpu_custom_call.1} parent=1 // pred_check_branch
      %204 = sbr.rel (0) target = $region37
    $region36: #{tpu_custom_call.1} parent=1 // pred_region
      %206 = vsyncadd [#allocation5], 0
      %s208 = sshll.u32 %s3, 4
      %s209 = int_to_ptr.hbm [resolvable:$true] %s208
      %211 = dma.smem_to_hbm [#allocation9], 16, %s209, [#allocation5]
    $region37: #{tpu_custom_call.1} parent=1 // pred_fallthru
      _
    // Predicated region
    $region38: #{tpu_custom_call.1} parent=1 // pred_check
      _
    $region39: #{tpu_custom_call.1} parent=1 // pred_check_branch
      %213 = sbr.rel (0) target = $region41
    $region40: #{tpu_custom_call.1} parent=1 // pred_region
      %215 = dma.done [#allocation5], 16
    $region41: #{tpu_custom_call.1} parent=1 // pred_fallthru
      _
    %216 = sfence
    %217 = vsyncpa [#allocation4], 1
    %218 = vsyncpa [#allocation7], 1
    %219 = vsyncpa [#allocation5], 1

</llo_original>
